<compile_context>
chip_gen: v7x
topology: tpu7x:2x2x1
jax: 0.10.0
libtpu: 0.0.40
codegen_flags: <defaults>
</compile_context>

<pallas_src>
import functools

import jax
import jax.numpy as jnp
from jax import lax
from jax.experimental import pallas as pl
from jax.experimental.pallas import tpu as pltpu


def resblock_kernel(x_ref, tbl_ref, w1_ref, w2_ref, o_ref, col_ref, h1e_ref,
                    *, W, CP, Cmid):
    # x_ref:   (CP, LANES)       channel-padded input, BT images folded on lanes
    # tbl_ref: (8 + 9, LANES)    rows 0..7: [ones; zeros x7] bias block,
    #                            rows 8..16: per-tap border masks (0/1), f32
    # w1_ref:  (Cmid, 9*CP + 8)  bf16: 3x3 weights + bias column (+ zero pad)
    # w2_ref:  (CP, Cmid + 8)    bf16: 1x1 weights + bias column (+ zero pad)
    # o_ref:   (CP, LANES)
    # col_ref: (9*CP + 8, LANES) f32 scratch: im2col + ones block
    # h1e_ref: (Cmid + 8, LANES) f32 scratch: hidden activations + ones block
    LANES = x_ref.shape[1]

    x = x_ref[...]                      # f32, residual branch (pre-ReLU)
    xr = jnp.maximum(x, 0.0)            # ReLU(x), f32

    # Build the 8-sublane-aligned im2col: tap t = (dy+1)*3 + (dx+1).  Each tap
    # is a pure lane rotation of the folded image times a precomputed border
    # mask that implements padding=1 (and also kills any roll that crosses an
    # image boundary inside the folded batch).
    t = 0
    for dy in (-1, 0, 1):
        for dx in (-1, 0, 1):
            off = dy * W + dx
            if off == 0:
                col = xr
            else:
                shifted = pltpu.roll(xr, (-off) % LANES, axis=1)  # [p] = xr[p+off]
                col = shifted * tbl_ref[pl.ds(8 + t, 1), :]
            col_ref[pl.ds(t * CP, CP), :] = col                   # aligned 8-row write
            t += 1
    col_ref[pl.ds(9 * CP, 8), :] = tbl_ref[pl.ds(0, 8), :]        # ones row (bias fold)

    # Conv3x3 (+ bias) as one bf16 MXU matmul with f32 accumulation.
    h1 = jnp.dot(w1_ref[...], col_ref[...].astype(jnp.bfloat16),
                 preferred_element_type=jnp.float32)              # (Cmid, LANES) f32
    h1 = jnp.maximum(h1, 0.0)                                     # ReLU in f32 (VPU)

    h1e_ref[pl.ds(0, Cmid), :] = h1
    h1e_ref[pl.ds(Cmid, 8), :] = tbl_ref[pl.ds(0, 8), :]          # ones row (bias fold)

    # Conv1x1 (+ bias) as a second bf16 matmul, then residual add in f32.
    y = jnp.dot(w2_ref[...], h1e_ref[...].astype(jnp.bfloat16),
                preferred_element_type=jnp.float32)               # (CP, LANES) f32
    o_ref[...] = (y + x).astype(o_ref.dtype)                      # unmasked lane-dense store


def resblock_pallas(x_nchw, w1_hwio, b1, w2_io, b2, *, max_lanes=2048):
    """x_nchw: (B, Cin, H, W) f32; w1_hwio: (3,3,Cin,Cmid); w2_io: (Cmid,Cin)."""
    B, Cin, H, W = x_nchw.shape
    Cmid = w1_hwio.shape[3]
    HW = H * W
    CP = 8 * pl.cdiv(Cin, 8)              # channels padded to a full sublane group
    assert Cmid % 8 == 0, "toy sizes assumed; pad Cmid similarly otherwise"

    # Fold BT images onto lanes per grid step (the grid loop is sequential on
    # TPU, so fewer / fatter steps win at this size).
    BT = 1
    for d in range(1, B + 1):
        if B % d == 0 and d * HW <= max_lanes:
            BT = d
    LANES = BT * HW
    grid = (B // BT,)

    f32 = jnp.float32

    # ---- glue (tiny): fold batch onto lanes, zero-pad channels to CP ----
    x_fold = jnp.zeros((CP, B * HW), f32).at[:Cin].set(
        jnp.transpose(x_nchw, (1, 0, 2, 3)).reshape(Cin, B * HW))

    # ---- grid-invariant tables: ones block (bias fold) + 9 border masks ----
    pix = jnp.arange(LANES, dtype=jnp.int32) % HW
    hh, ww = pix // W, pix % W
    masks = []
    for dy in (-1, 0, 1):
        for dx in (-1, 0, 1):
            masks.append(((hh + dy >= 0) & (hh + dy < H) &
                          (ww + dx >= 0) & (ww + dx < W)).astype(f32))
    ones_blk = jnp.zeros((8, LANES), f32).at[0].set(1.0)
    tbl = jnp.concatenate([ones_blk, jnp.stack(masks)], axis=0)       # (17, LANES)

    # ---- weights: repack to [out, tap*CP + in], fold bias, cast to bf16 ----
    K1 = 9 * CP + 8
    w1_t = jnp.transpose(w1_hwio, (3, 0, 1, 2)).reshape(Cmid, 9, Cin)  # [o, tap, i]
    w1_pad = jnp.zeros((Cmid, 9, CP), f32).at[:, :, :Cin].set(w1_t)
    w1_mat = jnp.concatenate(
        [w1_pad.reshape(Cmid, 9 * CP), b1.reshape(Cmid, 1),
         jnp.zeros((Cmid, 7), f32)], axis=1).astype(jnp.bfloat16)      # (Cmid, K1)

    K2 = Cmid + 8
    w2_pad = jnp.zeros((CP, Cmid), f32).at[:Cin].set(w2_io.T)          # [o, i], padded
    b2_pad = jnp.zeros((CP, 1), f32).at[:Cin, 0].set(b2)
    w2_mat = jnp.concatenate(
        [w2_pad, b2_pad, jnp.zeros((CP, 7), f32)], axis=1).astype(jnp.bfloat16)  # (CP, K2)

    kernel = functools.partial(resblock_kernel, W=W, CP=CP, Cmid=Cmid)

    out = pl.pallas_call(
        kernel,
        out_shape=jax.ShapeDtypeStruct((CP, B * HW), x_nchw.dtype),
        grid_spec=pltpu.PrefetchScalarGridSpec(
            num_scalar_prefetch=0,
            grid=grid,
            in_specs=[
                pl.BlockSpec((CP, LANES), lambda i: (0, i)),
                pl.BlockSpec((tbl.shape[0], LANES), lambda i: (0, 0)),  # resident tables
                pl.BlockSpec((Cmid, K1), lambda i: (0, 0)),             # resident weights
                pl.BlockSpec((CP, K2), lambda i: (0, 0)),
            ],
            out_specs=pl.BlockSpec((CP, LANES), lambda i: (0, i)),
            scratch_shapes=[
                pltpu.VMEM((K1, LANES), f32),     # im2col (+ ones block)
                pltpu.VMEM((K2, LANES), f32),     # hidden  (+ ones block)
            ],
        ),
        compiler_params=pltpu.CompilerParams(
            dimension_semantics=("parallel",)),
    )(x_fold, tbl, w1_mat, w2_mat)

    # Drop the padded channel rows (exact zeros) and unfold the batch.
    return jnp.transpose(out[:Cin].reshape(Cin, B, H, W), (1, 0, 2, 3))


def resblock_ref(x_nchw, w1_hwio, b1, w2_io, b2):
    """Pure-JAX f32 reference (same math as the PyTorch module)."""
    x = jnp.transpose(x_nchw, (0, 2, 3, 1))  # NHWC
    h = jnp.maximum(x, 0.0)
    h = lax.conv_general_dilated(
        h, w1_hwio, window_strides=(1, 1), padding="SAME",
        dimension_numbers=("NHWC", "HWIO", "NHWC"),
    ) + b1
    h = jnp.maximum(h, 0.0)
    w2_1x1 = w2_io.reshape(1, 1, *w2_io.shape)  # (1,1,Cmid,Cin) HWIO
    y = lax.conv_general_dilated(
        h, w2_1x1, window_strides=(1, 1), padding="VALID",
        dimension_numbers=("NHWC", "HWIO", "NHWC"),
    ) + b2
    y = y + x
    return jnp.transpose(y, (0, 3, 1, 2))


if __name__ == "__main__":
    B, Cin, Cmid, H, W = 2, 4, 8, 16, 16

    key = jax.random.PRNGKey(0)
    k_x, k_w1, k_b1, k_w2, k_b2 = jax.random.split(key, 5)

    # Deterministic synthetic parameters (shapes match nn.Conv2d(in,ch,3) and
    # nn.Conv2d(ch,in,1); stored in HWIO / (I,O) layout).
    x = jax.random.normal(k_x, (B, Cin, H, W), jnp.float32)
    w1 = jax.random.normal(k_w1, (3, 3, Cin, Cmid), jnp.float32) * 0.1
    b1 = jax.random.normal(k_b1, (Cmid,), jnp.float32) * 0.1
    w2 = jax.random.normal(k_w2, (Cmid, Cin), jnp.float32) * 0.1
    b2 = jax.random.normal(k_b2, (Cin,), jnp.float32) * 0.1

    out = jax.block_until_ready(resblock_pallas(x, w1, b1, w2, b2))
    ref = jax.block_until_ready(resblock_ref(x, w1, b1, w2, b2))

    assert out.shape == (B, Cin, H, W)
    # bf16 MXU operands (f32 accumulation & f32 residual) -> loosened tolerance.
    assert jnp.allclose(out, ref, atol=5e-2, rtol=5e-2), "mismatch vs reference"

    print("KERNEL_OK")
</pallas_src>

<mosaic_0001>
module attributes {stable_mosaic.version = 11 : i64} {
  func.func @resblock_kernel(%arg0: i32, %arg1: memref<8x512xf32, #tpu.memory_space<vmem>>, %arg2: memref<17x512xf32, #tpu.memory_space<vmem>>, %arg3: memref<8x80xbf16, #tpu.memory_space<vmem>>, %arg4: memref<8x16xbf16, #tpu.memory_space<vmem>>, %arg5: memref<8x512xf32, #tpu.memory_space<vmem>>, %arg6: memref<80x512xf32, #tpu.memory_space<vmem>>, %arg7: memref<16x512xf32, #tpu.memory_space<vmem>>) attributes {dimension_semantics = [#tpu.dimension_semantics<parallel>], iteration_bounds = array<i64: 1>, scalar_prefetch = 0 : i64, scratch_operands = 2 : i64, tpu.core_type = #tpu.core_type<tc>, window_params = [{transform_indices = @transform_0, window_bounds = array<i64: 8, 512>}, {pipeline_mode = #tpu.pipeline_mode<synchronous>, transform_indices = @transform_1, window_bounds = array<i64: 17, 512>}, {pipeline_mode = #tpu.pipeline_mode<synchronous>, transform_indices = @transform_2, window_bounds = array<i64: 8, 80>}, {pipeline_mode = #tpu.pipeline_mode<synchronous>, transform_indices = @transform_3, window_bounds = array<i64: 8, 16>}, {transform_indices = @transform_4, window_bounds = array<i64: 8, 512>}]} {
    %c0 = arith.constant 0 : index
    %c0_0 = arith.constant 0 : index
    %0 = vector.load %arg1[%c0, %c0_0] : memref<8x512xf32, #tpu.memory_space<vmem>>, vector<8x512xf32>
    %cst = arith.constant 0.000000e+00 : f32
    %1 = vector.broadcast %cst : f32 to vector<8x512xf32>
    %2 = arith.maximumf %0, %1 : vector<8x512xf32>
    %c17_i32 = arith.constant 17 : i32
    %3 = tpu.dynamic_rotate %2 by %c17_i32 dim 1 : vector<8x512xf32>, i32 -> vector<8x512xf32>
    %c8 = arith.constant 8 : index
    %c0_1 = arith.constant 0 : index
    %4 = vector.load %arg2[%c8, %c0_1] : memref<17x512xf32, #tpu.memory_space<vmem>>, vector<1x512xf32>
    %5 = vector.broadcast %4 : vector<1x512xf32> to vector<8x512xf32>
    %6 = arith.mulf %3, %5 : vector<8x512xf32>
    %c0_2 = arith.constant 0 : index
    %c0_3 = arith.constant 0 : index
    %7 = vector.load %arg6[%c0_2, %c0_3] : memref<80x512xf32, #tpu.memory_space<vmem>>, vector<8x512xf32>
    tpu.vector_store %arg6[%c0_2, %c0_3], %6 {strides = array<i32>} : memref<80x512xf32, #tpu.memory_space<vmem>>, vector<8x512xf32>,
    %c16_i32 = arith.constant 16 : i32
    %8 = tpu.dynamic_rotate %2 by %c16_i32 dim 1 : vector<8x512xf32>, i32 -> vector<8x512xf32>
    %c9 = arith.constant 9 : index
    %c0_4 = arith.constant 0 : index
    %9 = vector.load %arg2[%c9, %c0_4] : memref<17x512xf32, #tpu.memory_space<vmem>>, vector<1x512xf32>
    %10 = vector.broadcast %9 : vector<1x512xf32> to vector<8x512xf32>
    %11 = arith.mulf %8, %10 : vector<8x512xf32>
    %c8_5 = arith.constant 8 : index
    %c0_6 = arith.constant 0 : index
    %12 = vector.load %arg6[%c8_5, %c0_6] : memref<80x512xf32, #tpu.memory_space<vmem>>, vector<8x512xf32>
    tpu.vector_store %arg6[%c8_5, %c0_6], %11 {strides = array<i32>} : memref<80x512xf32, #tpu.memory_space<vmem>>, vector<8x512xf32>,
    %c15_i32 = arith.constant 15 : i32
    %13 = tpu.dynamic_rotate %2 by %c15_i32 dim 1 : vector<8x512xf32>, i32 -> vector<8x512xf32>
    %c10 = arith.constant 10 : index
    %c0_7 = arith.constant 0 : index
    %14 = vector.load %arg2[%c10, %c0_7] : memref<17x512xf32, #tpu.memory_space<vmem>>, vector<1x512xf32>
    %15 = vector.broadcast %14 : vector<1x512xf32> to vector<8x512xf32>
    %16 = arith.mulf %13, %15 : vector<8x512xf32>
    %c16 = arith.constant 16 : index
    %c0_8 = arith.constant 0 : index
    %17 = vector.load %arg6[%c16, %c0_8] : memref<80x512xf32, #tpu.memory_space<vmem>>, vector<8x512xf32>
    tpu.vector_store %arg6[%c16, %c0_8], %16 {strides = array<i32>} : memref<80x512xf32, #tpu.memory_space<vmem>>, vector<8x512xf32>,
    %c1_i32 = arith.constant 1 : i32
    %18 = tpu.dynamic_rotate %2 by %c1_i32 dim 1 : vector<8x512xf32>, i32 -> vector<8x512xf32>
    %c11 = arith.constant 11 : index
    %c0_9 = arith.constant 0 : index
    %19 = vector.load %arg2[%c11, %c0_9] : memref<17x512xf32, #tpu.memory_space<vmem>>, vector<1x512xf32>
    %20 = vector.broadcast %19 : vector<1x512xf32> to vector<8x512xf32>
    %21 = arith.mulf %18, %20 : vector<8x512xf32>
    %c24 = arith.constant 24 : index
    %c0_10 = arith.constant 0 : index
    %22 = vector.load %arg6[%c24, %c0_10] : memref<80x512xf32, #tpu.memory_space<vmem>>, vector<8x512xf32>
    tpu.vector_store %arg6[%c24, %c0_10], %21 {strides = array<i32>} : memref<80x512xf32, #tpu.memory_space<vmem>>, vector<8x512xf32>,
    %c32 = arith.constant 32 : index
    %c0_11 = arith.constant 0 : index
    %23 = vector.load %arg6[%c32, %c0_11] : memref<80x512xf32, #tpu.memory_space<vmem>>, vector<8x512xf32>
    tpu.vector_store %arg6[%c32, %c0_11], %2 {strides = array<i32>} : memref<80x512xf32, #tpu.memory_space<vmem>>, vector<8x512xf32>,
    %c511_i32 = arith.constant 511 : i32
    %24 = tpu.dynamic_rotate %2 by %c511_i32 dim 1 : vector<8x512xf32>, i32 -> vector<8x512xf32>
    %c13 = arith.constant 13 : index
    %c0_12 = arith.constant 0 : index
    %25 = vector.load %arg2[%c13, %c0_12] : memref<17x512xf32, #tpu.memory_space<vmem>>, vector<1x512xf32>
    %26 = vector.broadcast %25 : vector<1x512xf32> to vector<8x512xf32>
    %27 = arith.mulf %24, %26 : vector<8x512xf32>
    %c40 = arith.constant 40 : index
    %c0_13 = arith.constant 0 : index
    %28 = vector.load %arg6[%c40, %c0_13] : memref<80x512xf32, #tpu.memory_space<vmem>>, vector<8x512xf32>
    tpu.vector_store %arg6[%c40, %c0_13], %27 {strides = array<i32>} : memref<80x512xf32, #tpu.memory_space<vmem>>, vector<8x512xf32>,
    %c497_i32 = arith.constant 497 : i32
    %29 = tpu.dynamic_rotate %2 by %c497_i32 dim 1 : vector<8x512xf32>, i32 -> vector<8x512xf32>
    %c14 = arith.constant 14 : index
    %c0_14 = arith.constant 0 : index
    %30 = vector.load %arg2[%c14, %c0_14] : memref<17x512xf32, #tpu.memory_space<vmem>>, vector<1x512xf32>
    %31 = vector.broadcast %30 : vector<1x512xf32> to vector<8x512xf32>
    %32 = arith.mulf %29, %31 : vector<8x512xf32>
    %c48 = arith.constant 48 : index
    %c0_15 = arith.constant 0 : index
    %33 = vector.load %arg6[%c48, %c0_15] : memref<80x512xf32, #tpu.memory_space<vmem>>, vector<8x512xf32>
    tpu.vector_store %arg6[%c48, %c0_15], %32 {strides = array<i32>} : memref<80x512xf32, #tpu.memory_space<vmem>>, vector<8x512xf32>,
    %c496_i32 = arith.constant 496 : i32
    %34 = tpu.dynamic_rotate %2 by %c496_i32 dim 1 : vector<8x512xf32>, i32 -> vector<8x512xf32>
    %c15 = arith.constant 15 : index
    %c0_16 = arith.constant 0 : index
    %35 = vector.load %arg2[%c15, %c0_16] : memref<17x512xf32, #tpu.memory_space<vmem>>, vector<1x512xf32>
    %36 = vector.broadcast %35 : vector<1x512xf32> to vector<8x512xf32>
    %37 = arith.mulf %34, %36 : vector<8x512xf32>
    %c56 = arith.constant 56 : index
    %c0_17 = arith.constant 0 : index
    %38 = vector.load %arg6[%c56, %c0_17] : memref<80x512xf32, #tpu.memory_space<vmem>>, vector<8x512xf32>
    tpu.vector_store %arg6[%c56, %c0_17], %37 {strides = array<i32>} : memref<80x512xf32, #tpu.memory_space<vmem>>, vector<8x512xf32>,
    %c495_i32 = arith.constant 495 : i32
    %39 = tpu.dynamic_rotate %2 by %c495_i32 dim 1 : vector<8x512xf32>, i32 -> vector<8x512xf32>
    %c16_18 = arith.constant 16 : index
    %c0_19 = arith.constant 0 : index
    %40 = vector.load %arg2[%c16_18, %c0_19] : memref<17x512xf32, #tpu.memory_space<vmem>>, vector<1x512xf32>
    %41 = vector.broadcast %40 : vector<1x512xf32> to vector<8x512xf32>
    %42 = arith.mulf %39, %41 : vector<8x512xf32>
    %c64 = arith.constant 64 : index
    %c0_20 = arith.constant 0 : index
    %43 = vector.load %arg6[%c64, %c0_20] : memref<80x512xf32, #tpu.memory_space<vmem>>, vector<8x512xf32>
    tpu.vector_store %arg6[%c64, %c0_20], %42 {strides = array<i32>} : memref<80x512xf32, #tpu.memory_space<vmem>>, vector<8x512xf32>,
    %c0_21 = arith.constant 0 : index
    %c0_22 = arith.constant 0 : index
    %44 = vector.load %arg2[%c0_21, %c0_22] : memref<17x512xf32, #tpu.memory_space<vmem>>, vector<8x512xf32>
    %c72 = arith.constant 72 : index
    %c0_23 = arith.constant 0 : index
    %45 = vector.load %arg6[%c72, %c0_23] : memref<80x512xf32, #tpu.memory_space<vmem>>, vector<8x512xf32>
    tpu.vector_store %arg6[%c72, %c0_23], %44 {strides = array<i32>} : memref<80x512xf32, #tpu.memory_space<vmem>>, vector<8x512xf32>,
    %c0_24 = arith.constant 0 : index
    %c0_25 = arith.constant 0 : index
    %46 = vector.load %arg3[%c0_24, %c0_25] : memref<8x80xbf16, #tpu.memory_space<vmem>>, vector<8x80xbf16>
    %c0_26 = arith.constant 0 : index
    %c0_27 = arith.constant 0 : index
    %47 = vector.load %arg6[%c0_26, %c0_27] : memref<80x512xf32, #tpu.memory_space<vmem>>, vector<80x512xf32>
    %48 = arith.truncf %47 : vector<80x512xf32> to vector<80x512xbf16>
    %cst_28 = arith.constant dense<0.000000e+00> : vector<8x512xf32>
    %49 = tpu.matmul %46, %48, %cst_28 {dimension_numbers = #tpu.dot_dimension_numbers<[1], [0], [0], [1], [0, 0, 1, 1], [], []>} : vector<8x80xbf16>, vector<80x512xbf16>, vector<8x512xf32> -> vector<8x512xf32>
    %cst_29 = arith.constant 0.000000e+00 : f32
    %50 = vector.broadcast %cst_29 : f32 to vector<8x512xf32>
    %51 = arith.maximumf %49, %50 : vector<8x512xf32>
    %c0_30 = arith.constant 0 : index
    %c0_31 = arith.constant 0 : index
    %52 = vector.load %arg7[%c0_30, %c0_31] : memref<16x512xf32, #tpu.memory_space<vmem>>, vector<8x512xf32>
    tpu.vector_store %arg7[%c0_30, %c0_31], %51 {strides = array<i32>} : memref<16x512xf32, #tpu.memory_space<vmem>>, vector<8x512xf32>,
    %c0_32 = arith.constant 0 : index
    %c0_33 = arith.constant 0 : index
    %53 = vector.load %arg2[%c0_32, %c0_33] : memref<17x512xf32, #tpu.memory_space<vmem>>, vector<8x512xf32>
    %c8_34 = arith.constant 8 : index
    %c0_35 = arith.constant 0 : index
    %54 = vector.load %arg7[%c8_34, %c0_35] : memref<16x512xf32, #tpu.memory_space<vmem>>, vector<8x512xf32>
    tpu.vector_store %arg7[%c8_34, %c0_35], %53 {strides = array<i32>} : memref<16x512xf32, #tpu.memory_space<vmem>>, vector<8x512xf32>,
    %c0_36 = arith.constant 0 : index
    %c0_37 = arith.constant 0 : index
    %55 = vector.load %arg4[%c0_36, %c0_37] : memref<8x16xbf16, #tpu.memory_space<vmem>>, vector<8x16xbf16>
    %c0_38 = arith.constant 0 : index
    %c0_39 = arith.constant 0 : index
    %56 = vector.load %arg7[%c0_38, %c0_39] : memref<16x512xf32, #tpu.memory_space<vmem>>, vector<16x512xf32>
    %57 = arith.truncf %56 : vector<16x512xf32> to vector<16x512xbf16>
    %cst_40 = arith.constant dense<0.000000e+00> : vector<8x512xf32>
    %58 = tpu.matmul %55, %57, %cst_40 {dimension_numbers = #tpu.dot_dimension_numbers<[1], [0], [0], [1], [0, 0, 1, 1], [], []>} : vector<8x16xbf16>, vector<16x512xbf16>, vector<8x512xf32> -> vector<8x512xf32>
    %59 = arith.addf %58, %0 : vector<8x512xf32>
    %c0_41 = arith.constant 0 : index
    %c0_42 = arith.constant 0 : index
    %60 = vector.load %arg5[%c0_41, %c0_42] : memref<8x512xf32, #tpu.memory_space<vmem>>, vector<8x512xf32>
    tpu.vector_store %arg5[%c0_41, %c0_42], %59 {strides = array<i32>} : memref<8x512xf32, #tpu.memory_space<vmem>>, vector<8x512xf32>,
    return
  }
  func.func @transform_0(%arg0: i32) -> (i32, i32) {
    %c0_i32 = arith.constant 0 : i32
    %c0_i32_0 = arith.constant 0 : i32
    return %c0_i32, %arg0 : i32, i32
  }
  func.func @transform_1(%arg0: i32) -> (i32, i32) {
    %c0_i32 = arith.constant 0 : i32
    %c0_i32_0 = arith.constant 0 : i32
    %c0_i32_1 = arith.constant 0 : i32
    return %c0_i32, %c0_i32_0 : i32, i32
  }
  func.func @transform_2(%arg0: i32) -> (i32, i32) {
    %c0_i32 = arith.constant 0 : i32
    %c0_i32_0 = arith.constant 0 : i32
    %c0_i32_1 = arith.constant 0 : i32
    return %c0_i32, %c0_i32_0 : i32, i32
  }
  func.func @transform_3(%arg0: i32) -> (i32, i32) {
    %c0_i32 = arith.constant 0 : i32
    %c0_i32_0 = arith.constant 0 : i32
    %c0_i32_1 = arith.constant 0 : i32
    return %c0_i32, %c0_i32_0 : i32, i32
  }
  func.func @transform_4(%arg0: i32) -> (i32, i32) {
    %c0_i32 = arith.constant 0 : i32
    %c0_i32_0 = arith.constant 0 : i32
    return %c0_i32, %arg0 : i32, i32
  }
}

</mosaic_0001>

<llo_original>
// kernel: tpu_custom_call.1
$region0: #{tpu_custom_call.1}
  #allocation0 [shape = 'u32[]', space=smem, size = 0x4, offset = 0x4, fixed_abs, tag = 'smem constant byte address 0x4 - core index']
  #allocation1 [shape = 'u32[144,128]{1,0:T(1,128)}', space=vmem, size = 0x12000, scoped, tag = 'internal scratch']
  #allocation2 [shape = 'f32[80,512]{1,0:T(8,128)}', space=vmem, size = 0x28000, scoped, tag = 'scratch operand']
  #allocation3 [shape = 'f32[16,512]{1,0:T(8,128)}', space=vmem, size = 0x8000, scoped, tag = 'scratch operand']
  %s0 = inlined_call_operand.hbm [shape: f32[8,512], index: 0, kind: input, shape index: {}]
  %s1 = inlined_call_operand.hbm [shape: f32[17,512], index: 1, kind: input, shape index: {}]
  %s2 = inlined_call_operand.vmem [shape: bf16[8,80], index: 2, kind: input, shape index: {}]
  %s3 = inlined_call_operand.vmem [shape: bf16[8,16], index: 3, kind: input, shape index: {}]
  %s4 = inlined_call_operand.hbm [shape: f32[8,512], index: 4, kind: output, shape index: {}]
  %s5 = sld [smem:[#allocation0]]
  $region34: #{tpu_custom_call.1} parent=0
    _
  %s7 = ssub.s32 1, %s5
  %s8 = scalar_select 0, %s7, %s5
  $region1: #{tpu_custom_call.1} parent=0
    #allocation4 [shape = 'u8[16384]{0}', space=vmem, size = 0x4000, scoped, tag = 'input window, operand 0, single buffered']
    #allocation5 [shape = 's32[1]{0}', space=sflag, size = 0x4, scoped, tag = 'scoped memory for tpu_custom_call.1']
    #allocation6 [shape = 's32[1]{0}', space=sflag, size = 0x4, scoped, tag = 'scoped memory for tpu_custom_call.1']
    #allocation7 [shape = 'u8[49152]{0}', space=vmem, size = 0xc000, scoped, tag = 'input window, operand 1, single buffered']
    #allocation8 [shape = 's32[1]{0}', space=sflag, size = 0x4, scoped, tag = 'scoped memory for tpu_custom_call.1']
    #allocation9 [shape = 'u8[16384]{0}', space=vmem, size = 0x4000, scoped, tag = 'output window, operand 0, single buffered']
    %9 = vsyncpa [#allocation5], 0
    %10 = vsyncpa [#allocation8], 0
    %11 = vsyncpa [#allocation6], 0
    // Predicated region
    $region2: #{tpu_custom_call.1} parent=1 // pred_check
      _
    $region3: #{tpu_custom_call.1} parent=1 // pred_check_branch
      %13 = sbr.rel (0) target = $region5
    $region4: #{tpu_custom_call.1} parent=1 // pred_region
      %s15 = ssub.s32 512, 512
      %16 = vsyncadd [#allocation5], %s15
      %s18 = sshll.u32 [#allocation4], 4
      %s19 = int_to_ptr.vmem [resolvable:$true] %s18
      %21 = dma.hbm_to_vmem [thread:$0]  %s0, 512, %s19, [#allocation5]
    $region5: #{tpu_custom_call.1} parent=1 // pred_fallthru
      _
    // Predicated region
    $region6: #{tpu_custom_call.1} parent=1 // pred_check
      _
    $region7: #{tpu_custom_call.1} parent=1 // pred_check_branch
      %23 = sbr.rel (0) target = $region9
    $region8: #{tpu_custom_call.1} parent=1 // pred_region
      %s25 = ssub.s32 1536, 1536
      %26 = vsyncadd [#allocation8], %s25
      %s27 = sshll.u32 [#allocation7], 4
      %s28 = int_to_ptr.vmem [resolvable:$true] %s27
      %33 = dma.hbm_to_vmem [thread:$0]  %s1, 1536, %s28, [#allocation8], 512, 512, 32
    $region9: #{tpu_custom_call.1} parent=1 // pred_fallthru
      _
    // Predicated region
    $region10: #{tpu_custom_call.1} parent=1 // pred_check
      _
    $region11: #{tpu_custom_call.1} parent=1 // pred_check_branch
      %35 = sbr.rel (0) target = $region13
    $region12: #{tpu_custom_call.1} parent=1 // pred_region
      _
    $region13: #{tpu_custom_call.1} parent=1 // pred_fallthru
      _
    // Predicated region
    $region14: #{tpu_custom_call.1} parent=1 // pred_check
      _
    $region15: #{tpu_custom_call.1} parent=1 // pred_check_branch
      %37 = sbr.rel (0) target = $region17
    $region16: #{tpu_custom_call.1} parent=1 // pred_region
      _
    $region17: #{tpu_custom_call.1} parent=1 // pred_fallthru
      _
    // Predicated region
    $region18: #{tpu_custom_call.1} parent=1 // pred_check
      _
    $region19: #{tpu_custom_call.1} parent=1 // pred_check_branch
      %39 = sbr.rel (0) target = $region21
    $region20: #{tpu_custom_call.1} parent=1 // pred_region
      %40 = dma.done [#allocation5], 512
    $region21: #{tpu_custom_call.1} parent=1 // pred_fallthru
      _
    // Predicated region
    $region22: #{tpu_custom_call.1} parent=1 // pred_check
      _
    $region23: #{tpu_custom_call.1} parent=1 // pred_check_branch
      %42 = sbr.rel (0) target = $region25
    $region24: #{tpu_custom_call.1} parent=1 // pred_region
      %43 = dma.done [#allocation8], 1536
    $region25: #{tpu_custom_call.1} parent=1 // pred_fallthru
      _
    %v45 = vld [vmem:[#allocation4] sm:$0xff]
    %v46 = vld [vmem:[#allocation4 + $0x8] sm:$0xff]
    %v47 = vld [vmem:[#allocation4 + $0x10] sm:$0xff]
    %v48 = vld [vmem:[#allocation4 + $0x18] sm:$0xff]
    %v49 = vmax.f32 %v45, 0.0
    %v50 = vmax.f32 %v46, 0.0
    %v51 = vmax.f32 %v47, 0.0
    %v52 = vmax.f32 %v48, 0.0
    %53 = vrot.lane.b32.xlu0 %v49, 17
    %v54 = vpop.permute.xlu0 %53
    %55 = vrot.lane.b32.xlu0 %v50, 17
    %v56 = vpop.permute.xlu0 %55
    %57 = vrot.lane.b32.xlu0 %v51, 17
    %v58 = vpop.permute.xlu0 %57
    %59 = vrot.lane.b32.xlu0 %v52, 17
    %v60 = vpop.permute.xlu0 %59
    %v61 = vlaneseq
    %v62 = vand.u32 %v61, 127
    %vm63 = vcmp.lt.s32.totalorder %v62, 17
    %v64 = vsel %vm63, %v58, %v60
    %v65 = vsel %vm63, %v56, %v58
    %v66 = vsel %vm63, %v54, %v56
    %v67 = vsel %vm63, %v60, %v54
    %s68 = scalar_lea.vmem [#allocation7], 32
    %v69 = vld [vmem:[%s68] ss:$8 sm:$0xf]
    %v71 = vlaneseq
    %v72 = vshrl.u32 %v71, 7
    %v73 = vsub.s32 0, %v72
    %v74 = vrot.slane %v69, %v73
    %v75 = vlaneseq
    %v76 = vshrl.u32 %v75, 7
    %v77 = vsub.s32 1, %v76
    %v78 = vrot.slane %v69, %v77
    %v79 = vlaneseq
    %v80 = vshrl.u32 %v79, 7
    %v81 = vsub.s32 2, %v80
    %v82 = vrot.slane %v69, %v81
    %v83 = vlaneseq
    %v84 = vshrl.u32 %v83, 7
    %v85 = vsub.s32 3, %v84
    %v86 = vrot.slane %v69, %v85
    %v91 = vmul.f32 %v67, %v74
    %v92 = vmul.f32 %v66, %v78
    %v93 = vmul.f32 %v65, %v82
    %v94 = vmul.f32 %v64, %v86
    %95 = vst [vmem:[#allocation2] sm:$0xff] %v91
    %96 = vst [vmem:[#allocation2 + $0x8] sm:$0xff] %v92
    %97 = vst [vmem:[#allocation2 + $0x10] sm:$0xff] %v93
    %98 = vst [vmem:[#allocation2 + $0x18] sm:$0xff] %v94
    %99 = vrot.lane.b32.xlu0 %v49, 16
    %v100 = vpop.permute.xlu0 %99
    %101 = vrot.lane.b32.xlu0 %v50, 16
    %v102 = vpop.permute.xlu0 %101
    %103 = vrot.lane.b32.xlu0 %v51, 16
    %v104 = vpop.permute.xlu0 %103
    %105 = vrot.lane.b32.xlu0 %v52, 16
    %v106 = vpop.permute.xlu0 %105
    %vm107 = vcmp.lt.s32.totalorder %v62, 16
    %v108 = vsel %vm107, %v104, %v106
    %v109 = vsel %vm107, %v102, %v104
    %v110 = vsel %vm107, %v100, %v102
    %v111 = vsel %vm107, %v106, %v100
    %s112 = scalar_lea.vmem [#allocation7], 33
    %v113 = vld [vmem:[%s112] ss:$8 sm:$0xf]
    %v115 = vlaneseq
    %v116 = vshrl.u32 %v115, 7
    %v117 = vsub.s32 0, %v116
    %v118 = vrot.slane %v113, %v117
    %v119 = vlaneseq
    %v120 = vshrl.u32 %v119, 7
    %v121 = vsub.s32 1, %v120
    %v122 = vrot.slane %v113, %v121
    %v123 = vlaneseq
    %v124 = vshrl.u32 %v123, 7
    %v125 = vsub.s32 2, %v124
    %v126 = vrot.slane %v113, %v125
    %v127 = vlaneseq
    %v128 = vshrl.u32 %v127, 7
    %v129 = vsub.s32 3, %v128
    %v130 = vrot.slane %v113, %v129
    %v135 = vmul.f32 %v111, %v118
    %v136 = vmul.f32 %v110, %v122
    %v137 = vmul.f32 %v109, %v126
    %v138 = vmul.f32 %v108, %v130
    %139 = vst [vmem:[#allocation2 + $0x20] sm:$0xff] %v135
    %140 = vst [vmem:[#allocation2 + $0x28] sm:$0xff] %v136
    %141 = vst [vmem:[#allocation2 + $0x30] sm:$0xff] %v137
    %142 = vst [vmem:[#allocation2 + $0x38] sm:$0xff] %v138
    %143 = vrot.lane.b32.xlu0 %v49, 15
    %v144 = vpop.permute.xlu0 %143
    %145 = vrot.lane.b32.xlu0 %v50, 15
    %v146 = vpop.permute.xlu0 %145
    %147 = vrot.lane.b32.xlu0 %v51, 15
    %v148 = vpop.permute.xlu0 %147
    %149 = vrot.lane.b32.xlu0 %v52, 15
    %v150 = vpop.permute.xlu0 %149
    %vm151 = vcmp.lt.s32.totalorder %v62, 15
    %v152 = vsel %vm151, %v148, %v150
    %v153 = vsel %vm151, %v146, %v148
    %v154 = vsel %vm151, %v144, %v146
    %v155 = vsel %vm151, %v150, %v144
    %s156 = scalar_lea.vmem [#allocation7], 34
    %v157 = vld [vmem:[%s156] ss:$8 sm:$0xf]
    %v159 = vlaneseq
    %v160 = vshrl.u32 %v159, 7
    %v161 = vsub.s32 0, %v160
    %v162 = vrot.slane %v157, %v161
    %v163 = vlaneseq
    %v164 = vshrl.u32 %v163, 7
    %v165 = vsub.s32 1, %v164
    %v166 = vrot.slane %v157, %v165
    %v167 = vlaneseq
    %v168 = vshrl.u32 %v167, 7
    %v169 = vsub.s32 2, %v168
    %v170 = vrot.slane %v157, %v169
    %v171 = vlaneseq
    %v172 = vshrl.u32 %v171, 7
    %v173 = vsub.s32 3, %v172
    %v174 = vrot.slane %v157, %v173
    %v179 = vmul.f32 %v155, %v162
    %v180 = vmul.f32 %v154, %v166
    %v181 = vmul.f32 %v153, %v170
    %v182 = vmul.f32 %v152, %v174
    %183 = vst [vmem:[#allocation2 + $0x40] sm:$0xff] %v179
    %184 = vst [vmem:[#allocation2 + $0x48] sm:$0xff] %v180
    %185 = vst [vmem:[#allocation2 + $0x50] sm:$0xff] %v181
    %186 = vst [vmem:[#allocation2 + $0x58] sm:$0xff] %v182
    %187 = vrot.lane.b32.xlu0 %v49, 1
    %v188 = vpop.permute.xlu0 %187
    %189 = vrot.lane.b32.xlu0 %v50, 1
    %v190 = vpop.permute.xlu0 %189
    %191 = vrot.lane.b32.xlu0 %v51, 1
    %v192 = vpop.permute.xlu0 %191
    %193 = vrot.lane.b32.xlu0 %v52, 1
    %v194 = vpop.permute.xlu0 %193
    %vm195 = vcmp.lt.s32.totalorder %v62, 1
    %v196 = vsel %vm195, %v192, %v194
    %v197 = vsel %vm195, %v190, %v192
    %v198 = vsel %vm195, %v188, %v190
    %v199 = vsel %vm195, %v194, %v188
    %s200 = scalar_lea.vmem [#allocation7], 35
    %v201 = vld [vmem:[%s200] ss:$8 sm:$0xf]
    %v203 = vlaneseq
    %v204 = vshrl.u32 %v203, 7
    %v205 = vsub.s32 0, %v204
    %v206 = vrot.slane %v201, %v205
    %v207 = vlaneseq
    %v208 = vshrl.u32 %v207, 7
    %v209 = vsub.s32 1, %v208
    %v210 = vrot.slane %v201, %v209
    %v211 = vlaneseq
    %v212 = vshrl.u32 %v211, 7
    %v213 = vsub.s32 2, %v212
    %v214 = vrot.slane %v201, %v213
    %v215 = vlaneseq
    %v216 = vshrl.u32 %v215, 7
    %v217 = vsub.s32 3, %v216
    %v218 = vrot.slane %v201, %v217
    %v223 = vmul.f32 %v199, %v206
    %v224 = vmul.f32 %v198, %v210
    %v225 = vmul.f32 %v197, %v214
    %v226 = vmul.f32 %v196, %v218
    %227 = vst [vmem:[#allocation2 + $0x60] sm:$0xff] %v223
    %228 = vst [vmem:[#allocation2 + $0x68] sm:$0xff] %v224
    %229 = vst [vmem:[#allocation2 + $0x70] sm:$0xff] %v225
    %230 = vst [vmem:[#allocation2 + $0x78] sm:$0xff] %v226
    %231 = vst [vmem:[#allocation2 + $0x80] sm:$0xff] %v49
    %232 = vst [vmem:[#allocation2 + $0x88] sm:$0xff] %v50
    %233 = vst [vmem:[#allocation2 + $0x90] sm:$0xff] %v51
    %234 = vst [vmem:[#allocation2 + $0x98] sm:$0xff] %v52
    %235 = vrot.lane.b32.xlu0 %v49, 127
    %v236 = vpop.permute.xlu0 %235
    %237 = vrot.lane.b32.xlu0 %v50, 127
    %v238 = vpop.permute.xlu0 %237
    %239 = vrot.lane.b32.xlu0 %v51, 127
    %v240 = vpop.permute.xlu0 %239
    %241 = vrot.lane.b32.xlu0 %v52, 127
    %v242 = vpop.permute.xlu0 %241
    %vm243 = vcmp.lt.s32.totalorder %v62, 127
    %v244 = vsel %vm243, %v240, %v242
    %v245 = vsel %vm243, %v238, %v240
    %v246 = vsel %vm243, %v236, %v238
    %v247 = vsel %vm243, %v242, %v236
    %s248 = scalar_lea.vmem [#allocation7], 37
    %v249 = vld [vmem:[%s248] ss:$8 sm:$0xf]
    %v251 = vlaneseq
    %v252 = vshrl.u32 %v251, 7
    %v253 = vsub.s32 0, %v252
    %v254 = vrot.slane %v249, %v253
    %v255 = vlaneseq
    %v256 = vshrl.u32 %v255, 7
    %v257 = vsub.s32 1, %v256
    %v258 = vrot.slane %v249, %v257
    %v259 = vlaneseq
    %v260 = vshrl.u32 %v259, 7
    %v261 = vsub.s32 2, %v260
    %v262 = vrot.slane %v249, %v261
    %v263 = vlaneseq
    %v264 = vshrl.u32 %v263, 7
    %v265 = vsub.s32 3, %v264
    %v266 = vrot.slane %v249, %v265
    %v271 = vmul.f32 %v246, %v254
    %v272 = vmul.f32 %v245, %v258
    %v273 = vmul.f32 %v244, %v262
    %v274 = vmul.f32 %v247, %v266
    %275 = vst [vmem:[#allocation2 + $0xa0] sm:$0xff] %v271
    %276 = vst [vmem:[#allocation2 + $0xa8] sm:$0xff] %v272
    %277 = vst [vmem:[#allocation2 + $0xb0] sm:$0xff] %v273
    %278 = vst [vmem:[#allocation2 + $0xb8] sm:$0xff] %v274
    %279 = vrot.lane.b32.xlu0 %v49, 113
    %v280 = vpop.permute.xlu0 %279
    %281 = vrot.lane.b32.xlu0 %v50, 113
    %v282 = vpop.permute.xlu0 %281
    %283 = vrot.lane.b32.xlu0 %v51, 113
    %v284 = vpop.permute.xlu0 %283
    %285 = vrot.lane.b32.xlu0 %v52, 113
    %v286 = vpop.permute.xlu0 %285
    %vm287 = vcmp.lt.s32.totalorder %v62, 113
    %v288 = vsel %vm287, %v284, %v286
    %v289 = vsel %vm287, %v282, %v284
    %v290 = vsel %vm287, %v280, %v282
    %v291 = vsel %vm287, %v286, %v280
    %s292 = scalar_lea.vmem [#allocation7], 38
    %v293 = vld [vmem:[%s292] ss:$8 sm:$0xf]
    %v295 = vlaneseq
    %v296 = vshrl.u32 %v295, 7
    %v297 = vsub.s32 0, %v296
    %v298 = vrot.slane %v293, %v297
    %v299 = vlaneseq
    %v300 = vshrl.u32 %v299, 7
    %v301 = vsub.s32 1, %v300
    %v302 = vrot.slane %v293, %v301
    %v303 = vlaneseq
    %v304 = vshrl.u32 %v303, 7
    %v305 = vsub.s32 2, %v304
    %v306 = vrot.slane %v293, %v305
    %v307 = vlaneseq
    %v308 = vshrl.u32 %v307, 7
    %v309 = vsub.s32 3, %v308
    %v310 = vrot.slane %v293, %v309
    %v315 = vmul.f32 %v290, %v298
    %v316 = vmul.f32 %v289, %v302
    %v317 = vmul.f32 %v288, %v306
    %v318 = vmul.f32 %v291, %v310
    %319 = vst [vmem:[#allocation2 + $0xc0] sm:$0xff] %v315
    %320 = vst [vmem:[#allocation2 + $0xc8] sm:$0xff] %v316
    %321 = vst [vmem:[#allocation2 + $0xd0] sm:$0xff] %v317
    %322 = vst [vmem:[#allocation2 + $0xd8] sm:$0xff] %v318
    %323 = vrot.lane.b32.xlu0 %v49, 112
    %v324 = vpop.permute.xlu0 %323
    %325 = vrot.lane.b32.xlu0 %v50, 112
    %v326 = vpop.permute.xlu0 %325
    %327 = vrot.lane.b32.xlu0 %v51, 112
    %v328 = vpop.permute.xlu0 %327
    %329 = vrot.lane.b32.xlu0 %v52, 112
    %v330 = vpop.permute.xlu0 %329
    %vm331 = vcmp.lt.s32.totalorder %v62, 112
    %v332 = vsel %vm331, %v328, %v330
    %v333 = vsel %vm331, %v326, %v328
    %v334 = vsel %vm331, %v324, %v326
    %v335 = vsel %vm331, %v330, %v324
    %s336 = scalar_lea.vmem [#allocation7], 39
    %v337 = vld [vmem:[%s336] ss:$8 sm:$0xf]
    %v339 = vlaneseq
    %v340 = vshrl.u32 %v339, 7
    %v341 = vsub.s32 0, %v340
    %v342 = vrot.slane %v337, %v341
    %v343 = vlaneseq
    %v344 = vshrl.u32 %v343, 7
    %v345 = vsub.s32 1, %v344
    %v346 = vrot.slane %v337, %v345
    %v347 = vlaneseq
    %v348 = vshrl.u32 %v347, 7
    %v349 = vsub.s32 2, %v348
    %v350 = vrot.slane %v337, %v349
    %v351 = vlaneseq
    %v352 = vshrl.u32 %v351, 7
    %v353 = vsub.s32 3, %v352
    %v354 = vrot.slane %v337, %v353
    %v359 = vmul.f32 %v334, %v342
    %v360 = vmul.f32 %v333, %v346
    %v361 = vmul.f32 %v332, %v350
    %v362 = vmul.f32 %v335, %v354
    %363 = vst [vmem:[#allocation2 + $0xe0] sm:$0xff] %v359
    %364 = vst [vmem:[#allocation2 + $0xe8] sm:$0xff] %v360
    %365 = vst [vmem:[#allocation2 + $0xf0] sm:$0xff] %v361
    %366 = vst [vmem:[#allocation2 + $0xf8] sm:$0xff] %v362
    %367 = vrot.lane.b32.xlu0 %v49, 111
    %v368 = vpop.permute.xlu0 %367
    %369 = vrot.lane.b32.xlu0 %v50, 111
    %v370 = vpop.permute.xlu0 %369
    %371 = vrot.lane.b32.xlu0 %v51, 111
    %v372 = vpop.permute.xlu0 %371
    %373 = vrot.lane.b32.xlu0 %v52, 111
    %v374 = vpop.permute.xlu0 %373
    %vm375 = vcmp.lt.s32.totalorder %v62, 111
    %v376 = vsel %vm375, %v372, %v374
    %v377 = vsel %vm375, %v370, %v372
    %v378 = vsel %vm375, %v368, %v370
    %v379 = vsel %vm375, %v374, %v368
    %s380 = scalar_lea.vmem [#allocation7], 64
    %v381 = vld [vmem:[%s380] ss:$8 sm:$0xf]
    %v383 = vlaneseq
    %v384 = vshrl.u32 %v383, 7
    %v385 = vsub.s32 0, %v384
    %v386 = vrot.slane %v381, %v385
    %v387 = vlaneseq
    %v388 = vshrl.u32 %v387, 7
    %v389 = vsub.s32 1, %v388
    %v390 = vrot.slane %v381, %v389
    %v391 = vlaneseq
    %v392 = vshrl.u32 %v391, 7
    %v393 = vsub.s32 2, %v392
    %v394 = vrot.slane %v381, %v393
    %v395 = vlaneseq
    %v396 = vshrl.u32 %v395, 7
    %v397 = vsub.s32 3, %v396
    %v398 = vrot.slane %v381, %v397
    %v403 = vmul.f32 %v378, %v386
    %v404 = vmul.f32 %v377, %v390
    %v405 = vmul.f32 %v376, %v394
    %v406 = vmul.f32 %v379, %v398
    %407 = vst [vmem:[#allocation2 + $0x100] sm:$0xff] %v403
    %408 = vst [vmem:[#allocation2 + $0x108] sm:$0xff] %v404
    %409 = vst [vmem:[#allocation2 + $0x110] sm:$0xff] %v405
    %410 = vst [vmem:[#allocation2 + $0x118] sm:$0xff] %v406
    %v411 = vld [vmem:[#allocation7] sm:$0xff]
    %v412 = vld [vmem:[#allocation7 + $0x8] sm:$0xff]
    %v413 = vld [vmem:[#allocation7 + $0x10] sm:$0xff]
    %v414 = vld [vmem:[#allocation7 + $0x18] sm:$0xff]
    %415 = vst [vmem:[#allocation2 + $0x120] sm:$0xff] %v411
    %416 = vst [vmem:[#allocation2 + $0x128] sm:$0xff] %v412
    %417 = vst [vmem:[#allocation2 + $0x130] sm:$0xff] %v413
    %418 = vst [vmem:[#allocation2 + $0x138] sm:$0xff] %v414
    %v419 = vld [vmem:[%s2] sm:$0xf]
    %v420 = vld [vmem:[#allocation2] sm:$0xff]
    %v421 = vld [vmem:[#allocation2 + $0x8] sm:$0xff]
    %v422 = vld [vmem:[#allocation2 + $0x10] sm:$0xff]
    %v423 = vld [vmem:[#allocation2 + $0x18] sm:$0xff]
    %v424 = vld [vmem:[#allocation2 + $0x20] sm:$0xff]
    %v425 = vld [vmem:[#allocation2 + $0x28] sm:$0xff]
    %v426 = vld [vmem:[#allocation2 + $0x30] sm:$0xff]
    %v427 = vld [vmem:[#allocation2 + $0x38] sm:$0xff]
    %v428 = vld [vmem:[#allocation2 + $0x40] sm:$0xff]
    %v429 = vld [vmem:[#allocation2 + $0x48] sm:$0xff]
    %v430 = vld [vmem:[#allocation2 + $0x50] sm:$0xff]
    %v431 = vld [vmem:[#allocation2 + $0x58] sm:$0xff]
    %v432 = vld [vmem:[#allocation2 + $0x60] sm:$0xff]
    %v433 = vld [vmem:[#allocation2 + $0x68] sm:$0xff]
    %v434 = vld [vmem:[#allocation2 + $0x70] sm:$0xff]
    %v435 = vld [vmem:[#allocation2 + $0x78] sm:$0xff]
    %v436 = vld [vmem:[#allocation2 + $0x80] sm:$0xff]
    %v437 = vld [vmem:[#allocation2 + $0x88] sm:$0xff]
    %v438 = vld [vmem:[#allocation2 + $0x90] sm:$0xff]
    %v439 = vld [vmem:[#allocation2 + $0x98] sm:$0xff]
    %v440 = vld [vmem:[#allocation2 + $0xa0] sm:$0xff]
    %v441 = vld [vmem:[#allocation2 + $0xa8] sm:$0xff]
    %v442 = vld [vmem:[#allocation2 + $0xb0] sm:$0xff]
    %v443 = vld [vmem:[#allocation2 + $0xb8] sm:$0xff]
    %v444 = vld [vmem:[#allocation2 + $0xc0] sm:$0xff]
    %v445 = vld [vmem:[#allocation2 + $0xc8] sm:$0xff]
    %v446 = vld [vmem:[#allocation2 + $0xd0] sm:$0xff]
    %v447 = vld [vmem:[#allocation2 + $0xd8] sm:$0xff]
    %v448 = vld [vmem:[#allocation2 + $0xe0] sm:$0xff]
    %v449 = vld [vmem:[#allocation2 + $0xe8] sm:$0xff]
    %v450 = vld [vmem:[#allocation2 + $0xf0] sm:$0xff]
    %v451 = vld [vmem:[#allocation2 + $0xf8] sm:$0xff]
    %v452 = vld [vmem:[#allocation2 + $0x100] sm:$0xff]
    %v453 = vld [vmem:[#allocation2 + $0x108] sm:$0xff]
    %v454 = vld [vmem:[#allocation2 + $0x110] sm:$0xff]
    %v455 = vld [vmem:[#allocation2 + $0x118] sm:$0xff]
    %v456 = vld [vmem:[#allocation2 + $0x120] sm:$0xff]
    %v457 = vld [vmem:[#allocation2 + $0x128] sm:$0xff]
    %v458 = vld [vmem:[#allocation2 + $0x130] sm:$0xff]
    %v459 = vld [vmem:[#allocation2 + $0x138] sm:$0xff]
    %v460 = vpack.c.bf16 %v424, %v420
    %v461 = vpack.c.bf16 %v425, %v421
    %v462 = vpack.c.bf16 %v426, %v422
    %v463 = vpack.c.bf16 %v427, %v423
    %v464 = vpack.c.bf16 %v432, %v428
    %v465 = vpack.c.bf16 %v433, %v429
    %v466 = vpack.c.bf16 %v434, %v430
    %v467 = vpack.c.bf16 %v435, %v431
    %v468 = vpack.c.bf16 %v440, %v436
    %v469 = vpack.c.bf16 %v441, %v437
    %v470 = vpack.c.bf16 %v442, %v438
    %v471 = vpack.c.bf16 %v443, %v439
    %v472 = vpack.c.bf16 %v448, %v444
    %v473 = vpack.c.bf16 %v449, %v445
    %v474 = vpack.c.bf16 %v450, %v446
    %v475 = vpack.c.bf16 %v451, %v447
    %v476 = vpack.c.bf16 %v456, %v452
    %v477 = vpack.c.bf16 %v457, %v453
    %v478 = vpack.c.bf16 %v458, %v454
    %v479 = vpack.c.bf16 %v459, %v455
    %vm480 = vcmask 654336
    %v482 = vsel %vm480, %v419, 0
    %484 = vmatprep.subr.bf16.mxu0 %v461
    %485 = vmatpush1.bf16.msra.mxu0 %v460
    %486 = vmatprep.subr.bf16.mxu0 %v465
    %487 = vmatpush1.bf16.msra.mxu0 %v464
    %488 = vmatprep.subr.bf16.mxu0 %v469
    %489 = vmatpush1.bf16.msra.mxu0 %v468
    %490 = vmatprep.subr.bf16.mxu0 %v473
    %491 = vmatpush1.bf16.msra.mxu0 %v472
    %492 = vmatprep.subr.bf16.mxu0 %v477
    %493 = vmatpush1.bf16.msra.mxu0 %v476
    %494 = vmatprep.subr.bf16.mxu0 0
    %495 = vmatpush1.bf16.msra.mxu0 0
    %496 = vmatprep.subr.bf16.mxu0 0
    %497 = vmatpush1.bf16.msra.mxu0 0
    %498 = vmatprep.subr.bf16.mxu0 0
    %499 = vmatpush1.bf16.msra.mxu0 0
    %500 = vmatprep.subr.bf16.mxu0 0
    %501 = vmatpush1.bf16.msra.mxu0 0
    %502 = vmatprep.subr.bf16.mxu0 0
    %503 = vmatpush1.bf16.msra.mxu0 0
    %504 = vmatprep.subr.bf16.mxu0 0
    %505 = vmatpush1.bf16.msra.mxu0 0
    %506 = vmatprep.subr.bf16.mxu0 0
    %507 = vmatpush1.bf16.msra.mxu0 0
    %508 = vmatprep.subr.bf16.mxu0 0
    %509 = vmatpush1.bf16.msra.mxu0 0
    %510 = vmatprep.subr.bf16.mxu0 0
    %511 = vmatpush1.bf16.msra.mxu0 0
    %512 = vmatprep.subr.bf16.mxu0 0
    %513 = vmatpush1.bf16.msra.mxu0 0
    %514 = vmatprep.subr.bf16.mxu0 0
    %515 = vmatpush1.bf16.msra.mxu0 0
    %516 = vmatprep.mubr.bf16.mxu0 0
    %517 = vmatmul.mubr.bf16.gmra.mrb[0].mxu0 %v482
    %v518 = vpop.f32.mrb[0].mxu0
    %v519 = vadd.f32 0.0, %v518
    %v520 = vpop.f32.mrb[0].mxu0
    %v521 = vadd.f32 0.0, %v520
    %v522 = vpop.f32.mrb[0].mxu0
    %v523 = vpop.f32.mrb[0].mxu0
    %524 = vdwg.mxu0
    %525 = vmatprep.subr.bf16.mxu0 %v463
    %526 = vmatpush1.bf16.msra.mxu0 %v462
    %527 = vmatprep.subr.bf16.mxu0 %v467
    %528 = vmatpush1.bf16.msra.mxu0 %v466
    %529 = vmatprep.subr.bf16.mxu0 %v471
    %530 = vmatpush1.bf16.msra.mxu0 %v470
    %531 = vmatprep.subr.bf16.mxu0 %v475
    %532 = vmatpush1.bf16.msra.mxu0 %v474
    %533 = vmatprep.subr.bf16.mxu0 %v479
    %534 = vmatpush1.bf16.msra.mxu0 %v478
    %535 = vmatprep.subr.bf16.mxu0 0
    %536 = vmatpush1.bf16.msra.mxu0 0
    %537 = vmatprep.subr.bf16.mxu0 0
    %538 = vmatpush1.bf16.msra.mxu0 0
    %539 = vmatprep.subr.bf16.mxu0 0
    %540 = vmatpush1.bf16.msra.mxu0 0
    %541 = vmatprep.subr.bf16.mxu0 0
    %542 = vmatpush1.bf16.msra.mxu0 0
    %543 = vmatprep.subr.bf16.mxu0 0
    %544 = vmatpush1.bf16.msra.mxu0 0
    %545 = vmatprep.subr.bf16.mxu0 0
    %546 = vmatpush1.bf16.msra.mxu0 0
    %547 = vmatprep.subr.bf16.mxu0 0
    %548 = vmatpush1.bf16.msra.mxu0 0
    %549 = vmatprep.subr.bf16.mxu0 0
    %550 = vmatpush1.bf16.msra.mxu0 0
    %551 = vmatprep.subr.bf16.mxu0 0
    %552 = vmatpush1.bf16.msra.mxu0 0
    %553 = vmatprep.subr.bf16.mxu0 0
    %554 = vmatpush1.bf16.msra.mxu0 0
    %555 = vmatprep.subr.bf16.mxu0 0
    %556 = vmatpush1.bf16.msra.mxu0 0
    %557 = vmatprep.mubr.bf16.mxu0 0
    %558 = vmatmul.mubr.bf16.gmra.mrb[0].mxu0 %v482
    %v559 = vpop.f32.mrb[0].mxu0
    %v560 = vadd.f32 0.0, %v559
    %v561 = vpop.f32.mrb[0].mxu0
    %v562 = vadd.f32 0.0, %v561
    %v563 = vpop.f32.mrb[0].mxu0
    %v564 = vpop.f32.mrb[0].mxu0
    %565 = vdwg.mxu0
    %v566 = vmax.f32 %v519, 0.0
    %v567 = vmax.f32 %v521, 0.0
    %v568 = vmax.f32 %v560, 0.0
    %v569 = vmax.f32 %v562, 0.0
    %570 = vst [vmem:[#allocation3] sm:$0xff] %v566
    %571 = vst [vmem:[#allocation3 + $0x8] sm:$0xff] %v567
    %572 = vst [vmem:[#allocation3 + $0x10] sm:$0xff] %v568
    %573 = vst [vmem:[#allocation3 + $0x18] sm:$0xff] %v569
    %v574 = vld [vmem:[#allocation7] sm:$0xff]
    %v575 = vld [vmem:[#allocation7 + $0x8] sm:$0xff]
    %v576 = vld [vmem:[#allocation7 + $0x10] sm:$0xff]
    %v577 = vld [vmem:[#allocation7 + $0x18] sm:$0xff]
    %578 = vst [vmem:[#allocation3 + $0x20] sm:$0xff] %v574
    %579 = vst [vmem:[#allocation3 + $0x28] sm:$0xff] %v575
    %580 = vst [vmem:[#allocation3 + $0x30] sm:$0xff] %v576
    %581 = vst [vmem:[#allocation3 + $0x38] sm:$0xff] %v577
    %v582 = vld [vmem:[%s3] sm:$0xf]
    %v583 = vld [vmem:[#allocation3] sm:$0xff]
    %v584 = vld [vmem:[#allocation3 + $0x8] sm:$0xff]
    %v585 = vld [vmem:[#allocation3 + $0x10] sm:$0xff]
    %v586 = vld [vmem:[#allocation3 + $0x18] sm:$0xff]
    %v587 = vld [vmem:[#allocation3 + $0x20] sm:$0xff]
    %v588 = vld [vmem:[#allocation3 + $0x28] sm:$0xff]
    %v589 = vld [vmem:[#allocation3 + $0x30] sm:$0xff]
    %v590 = vld [vmem:[#allocation3 + $0x38] sm:$0xff]
    %v591 = vpack.c.bf16 %v587, %v583
    %v592 = vpack.c.bf16 %v588, %v584
    %v593 = vpack.c.bf16 %v589, %v585
    %v594 = vpack.c.bf16 %v590, %v586
    %vm595 = vcmask 130048
    %v597 = vsel %vm595, %v582, 0
    %599 = vmatprep.subr.bf16.mxu0 %v592
    %600 = vmatpush1.bf16.msra.mxu0 %v591
    %601 = vmatprep.subr.bf16.mxu0 0
    %602 = vmatpush1.bf16.msra.mxu0 0
    %603 = vmatprep.subr.bf16.mxu0 0
    %604 = vmatpush1.bf16.msra.mxu0 0
    %605 = vmatprep.subr.bf16.mxu0 0
    %606 = vmatpush1.bf16.msra.mxu0 0
    %607 = vmatprep.subr.bf16.mxu0 0
    %608 = vmatpush1.bf16.msra.mxu0 0
    %609 = vmatprep.subr.bf16.mxu0 0
    %610 = vmatpush1.bf16.msra.mxu0 0
    %611 = vmatprep.subr.bf16.mxu0 0
    %612 = vmatpush1.bf16.msra.mxu0 0
    %613 = vmatprep.subr.bf16.mxu0 0
    %614 = vmatpush1.bf16.msra.mxu0 0
    %615 = vmatprep.subr.bf16.mxu0 0
    %616 = vmatpush1.bf16.msra.mxu0 0
    %617 = vmatprep.subr.bf16.mxu0 0
    %618 = vmatpush1.bf16.msra.mxu0 0
    %619 = vmatprep.subr.bf16.mxu0 0
    %620 = vmatpush1.bf16.msra.mxu0 0
    %621 = vmatprep.subr.bf16.mxu0 0
    %622 = vmatpush1.bf16.msra.mxu0 0
    %623 = vmatprep.subr.bf16.mxu0 0
    %624 = vmatpush1.bf16.msra.mxu0 0
    %625 = vmatprep.subr.bf16.mxu0 0
    %626 = vmatpush1.bf16.msra.mxu0 0
    %627 = vmatprep.subr.bf16.mxu0 0
    %628 = vmatpush1.bf16.msra.mxu0 0
    %629 = vmatprep.subr.bf16.mxu0 0
    %630 = vmatpush1.bf16.msra.mxu0 0
    %631 = vmatprep.mubr.bf16.mxu0 0
    %632 = vmatmul.mubr.bf16.gmra.mrb[0].mxu0 %v597
    %v633 = vpop.f32.mrb[0].mxu0
    %v634 = vadd.f32 %v45, %v633
    %v635 = vpop.f32.mrb[0].mxu0
    %v636 = vadd.f32 %v46, %v635
    %v637 = vpop.f32.mrb[0].mxu0
    %v638 = vpop.f32.mrb[0].mxu0
    %639 = vdwg.mxu0
    %640 = vmatprep.subr.bf16.mxu0 %v594
    %641 = vmatpush1.bf16.msra.mxu0 %v593
    %642 = vmatprep.subr.bf16.mxu0 0
    %643 = vmatpush1.bf16.msra.mxu0 0
    %644 = vmatprep.subr.bf16.mxu0 0
    %645 = vmatpush1.bf16.msra.mxu0 0
    %646 = vmatprep.subr.bf16.mxu0 0
    %647 = vmatpush1.bf16.msra.mxu0 0
    %648 = vmatprep.subr.bf16.mxu0 0
    %649 = vmatpush1.bf16.msra.mxu0 0
    %650 = vmatprep.subr.bf16.mxu0 0
    %651 = vmatpush1.bf16.msra.mxu0 0
    %652 = vmatprep.subr.bf16.mxu0 0
    %653 = vmatpush1.bf16.msra.mxu0 0
    %654 = vmatprep.subr.bf16.mxu0 0
    %655 = vmatpush1.bf16.msra.mxu0 0
    %656 = vmatprep.subr.bf16.mxu0 0
    %657 = vmatpush1.bf16.msra.mxu0 0
    %658 = vmatprep.subr.bf16.mxu0 0
    %659 = vmatpush1.bf16.msra.mxu0 0
    %660 = vmatprep.subr.bf16.mxu0 0
    %661 = vmatpush1.bf16.msra.mxu0 0
    %662 = vmatprep.subr.bf16.mxu0 0
    %663 = vmatpush1.bf16.msra.mxu0 0
    %664 = vmatprep.subr.bf16.mxu0 0
    %665 = vmatpush1.bf16.msra.mxu0 0
    %666 = vmatprep.subr.bf16.mxu0 0
    %667 = vmatpush1.bf16.msra.mxu0 0
    %668 = vmatprep.subr.bf16.mxu0 0
    %669 = vmatpush1.bf16.msra.mxu0 0
    %670 = vmatprep.subr.bf16.mxu0 0
    %671 = vmatpush1.bf16.msra.mxu0 0
    %672 = vmatprep.mubr.bf16.mxu0 0
    %673 = vmatmul.mubr.bf16.gmra.mrb[0].mxu0 %v597
    %v674 = vpop.f32.mrb[0].mxu0
    %v675 = vadd.f32 %v47, %v674
    %v676 = vpop.f32.mrb[0].mxu0
    %v677 = vadd.f32 %v48, %v676
    %v678 = vpop.f32.mrb[0].mxu0
    %v679 = vpop.f32.mrb[0].mxu0
    %680 = vdwg.mxu0
    %681 = vst [vmem:[#allocation9] sm:$0xff] %v634
    %682 = vst [vmem:[#allocation9 + $0x8] sm:$0xff] %v636
    %683 = vst [vmem:[#allocation9 + $0x10] sm:$0xff] %v675
    %684 = vst [vmem:[#allocation9 + $0x18] sm:$0xff] %v677
    // Predicated region
    $region26: #{tpu_custom_call.1} parent=1 // pred_check
      _
    $region27: #{tpu_custom_call.1} parent=1 // pred_check_branch
      %686 = sbr.rel (0) target = $region29
    $region28: #{tpu_custom_call.1} parent=1 // pred_region
      %s688 = ssub.s32 512, 512
      %689 = vsyncadd [#allocation6], %s688
      %s691 = sshll.u32 [#allocation9], 4
      %s692 = int_to_ptr.vmem [resolvable:$true] %s691
      %694 = dma.vmem_to_hbm [thread:$0]  %s692, 512, %s4, [#allocation6]
    $region29: #{tpu_custom_call.1} parent=1 // pred_fallthru
      _
    // Predicated region
    $region30: #{tpu_custom_call.1} parent=1 // pred_check
      _
    $region31: #{tpu_custom_call.1} parent=1 // pred_check_branch
      %696 = sbr.rel (0) target = $region33
    $region32: #{tpu_custom_call.1} parent=1 // pred_region
      %697 = dma.done [#allocation6], 512
    $region33: #{tpu_custom_call.1} parent=1 // pred_fallthru
      _
    %698 = vsyncpa [#allocation5], 1
    %699 = vsyncpa [#allocation8], 1
    %700 = vsyncpa [#allocation6], 1

</llo_original>
